<compile_context>
chip_gen: v7x
topology: tpu7x:2x2x1
jax: 0.10.0
libtpu: 0.0.40
codegen_flags: <defaults>
</compile_context>

<pallas_src>
import functools

import jax
import jax.numpy as jnp
from jax.experimental import pallas as pl
from jax.experimental.pallas import tpu as pltpu


def _conditioning_kernel(obs_ref, unc_ref,
                         w1a_ref, w1b_ref, b1_ref,
                         w2_ref, b2_ref,
                         w3_ref, b3_ref,
                         o_ref):
    # obs/unc: (tb, dim)   w1a/w1b: (dim, H)   w2/w3: (H, H)   biases: (1, H)
    # Layer 1: fused concat -> split matmul, f32 accumulation on the MXU.
    h = jnp.dot(obs_ref[...], w1a_ref[...], preferred_element_type=jnp.float32)
    h = h + jnp.dot(unc_ref[...], w1b_ref[...],
                    preferred_element_type=jnp.float32)
    h = jnp.maximum(h + b1_ref[...], 0.0)

    # Layer 2 (cast activations to the weight dtype for the MXU; acc stays f32).
    h = jnp.dot(h.astype(w2_ref.dtype), w2_ref[...],
                preferred_element_type=jnp.float32)
    h = jnp.maximum(h + b2_ref[...], 0.0)

    # Layer 3.
    h = jnp.dot(h.astype(w3_ref.dtype), w3_ref[...],
                preferred_element_type=jnp.float32)
    h = jnp.maximum(h + b3_ref[...], 0.0)

    o_ref[...] = h.astype(o_ref.dtype)


def _round_up(x, m):
    return (x + m - 1) // m * m


@functools.partial(jax.jit, static_argnames=("tb", "use_bf16"))
def enhanced_recognition_forward(observed_data, uncertainties, params, *,
                                 tb=256, use_bf16=False):
    """Pallas forward pass of the conditioning_net.

    observed_data, uncertainties: (B, dim) float32
    params: dict with w1 (2*dim, H), w2/w3 (H, H), b1/b2/b3 (1, H)
    """
    B, dim = observed_data.shape
    H = params["w1"].shape[1]

    # Batch tile: big enough to amortize per-grid-step overhead (~0.35 us),
    # capped at the (sublane-padded) batch so small batches take one step.
    tb_eff = min(tb, _round_up(B, 8))
    Bp = _round_up(B, tb_eff)
    if Bp != B:
        pad = ((0, Bp - B), (0, 0))
        observed_data = jnp.pad(observed_data, pad)
        uncertainties = jnp.pad(uncertainties, pad)

    # Optional bf16 operands for the MXU (v6e/v7x); accumulation stays f32 and
    # bias + ReLU run on the f32 accumulator inside the kernel.
    w_dtype = jnp.bfloat16 if use_bf16 else jnp.float32
    w1 = params["w1"].astype(w_dtype)
    w1a, w1b = w1[:dim], w1[dim:]            # fused-concat split of layer 1
    w2 = params["w2"].astype(w_dtype)
    w3 = params["w3"].astype(w_dtype)
    b1 = params["b1"].astype(jnp.float32)
    b2 = params["b2"].astype(jnp.float32)
    b3 = params["b3"].astype(jnp.float32)
    obs = observed_data.astype(w_dtype)
    unc = uncertainties.astype(w_dtype)

    grid = (Bp // tb_eff,)
    # Grid-invariant blocks: fetched once, stay VMEM-resident across the grid.
    full = lambda shape: pl.BlockSpec(shape, lambda i: (0, 0))

    out = pl.pallas_call(
        _conditioning_kernel,
        out_shape=jax.ShapeDtypeStruct((Bp, H), jnp.float32),
        grid_spec=pltpu.PrefetchScalarGridSpec(
            num_scalar_prefetch=0,
            grid=grid,
            in_specs=[
                pl.BlockSpec((tb_eff, dim), lambda i: (i, 0)),  # observed tile
                pl.BlockSpec((tb_eff, dim), lambda i: (i, 0)),  # uncert. tile
                full((dim, H)),                                 # w1 (top half)
                full((dim, H)),                                 # w1 (bottom)
                full((1, H)),                                   # b1
                full((H, H)),                                   # w2
                full((1, H)),                                   # b2
                full((H, H)),                                   # w3
                full((1, H)),                                   # b3
            ],
            out_specs=pl.BlockSpec((tb_eff, H), lambda i: (i, 0)),
        ),
        # Batch axis is embarrassingly parallel -> shards across v7x's 2 TCs.
        # NOTE: for very large H (>= 2048) on v7x, K-tile w2/w3 (add a grid
        # axis) to stay inside the 64 MiB VMEM; at H=128 everything fits.
        compiler_params=pltpu.CompilerParams(
            dimension_semantics=("parallel",)),
    )(obs, unc, w1a, w1b, b1, w2, b2, w3, b3)

    return out[:B]


def init_params(key, dim, hidden_dim):
    """Deterministic synthetic parameters (shapes match the nn.Linear layers)."""
    k1, k2, k3, k4, k5, k6 = jax.random.split(key, 6)
    f_in = dim * 2

    def uinit(k, shape, fan_in):
        bound = 1.0 / jnp.sqrt(fan_in)
        return jax.random.uniform(k, shape, jnp.float32, -bound, bound)

    return {
        "w1": uinit(k1, (f_in, hidden_dim), f_in),
        "b1": uinit(k2, (1, hidden_dim), f_in),
        "w2": uinit(k3, (hidden_dim, hidden_dim), hidden_dim),
        "b2": uinit(k4, (1, hidden_dim), hidden_dim),
        "w3": uinit(k5, (hidden_dim, hidden_dim), hidden_dim),
        "b3": uinit(k6, (1, hidden_dim), hidden_dim),
    }


def _reference_forward(observed_data, uncertainties, params):
    x = jnp.concatenate([observed_data, uncertainties], axis=1)
    h = jnp.maximum(x @ params["w1"] + params["b1"], 0.0)
    h = jnp.maximum(h @ params["w2"] + params["b2"], 0.0)
    h = jnp.maximum(h @ params["w3"] + params["b3"], 0.0)
    return h


# TODO(synk): sample()/log_prob() use nflows rational-quadratic spline
# autoregressive transforms; only forward() (the conditioning net) is
# implemented as a Pallas kernel here.

if __name__ == "__main__":
    dim = 2
    hidden_dim = 128   # module default -> lane-dense (128-lane) output blocks
    batch = 16

    key = jax.random.PRNGKey(0)
    kp, ko, ku = jax.random.split(key, 3)

    params = init_params(kp, dim, hidden_dim)
    observed_data = jax.random.normal(ko, (batch, dim), jnp.float32)
    uncertainties = jax.random.uniform(ku, (batch, dim), jnp.float32)

    # f32 path (exact vs reference).
    out = enhanced_recognition_forward(observed_data, uncertainties, params)
    out = jax.block_until_ready(out)
    ref = _reference_forward(observed_data, uncertainties, params)
    assert out.shape == (batch, hidden_dim)
    assert jnp.allclose(out, ref, atol=1e-5, rtol=1e-5), "f32 mismatch vs reference"

    # Ragged batch exercises the pad + slice path.
    out_ragged = enhanced_recognition_forward(
        observed_data[:13], uncertainties[:13], params)
    out_ragged = jax.block_until_ready(out_ragged)
    assert out_ragged.shape == (13, hidden_dim)
    assert jnp.allclose(out_ragged, ref[:13], atol=1e-5, rtol=1e-5), \
        "ragged-batch mismatch vs reference"

    # bf16 operand path (f32 accumulation) — loose tolerance.
    out_bf16 = enhanced_recognition_forward(
        observed_data, uncertainties, params, use_bf16=True)
    out_bf16 = jax.block_until_ready(out_bf16)
    assert jnp.allclose(out_bf16, ref, atol=1e-1, rtol=1e-1), \
        "bf16 path diverged from reference"

    print("KERNEL_OK")
</pallas_src>

<mosaic_0001>
module attributes {stable_mosaic.version = 11 : i64} {
  func.func @_conditioning_kernel(%arg0: i32, %arg1: memref<16x2xf32, #tpu.memory_space<vmem>>, %arg2: memref<16x2xf32, #tpu.memory_space<vmem>>, %arg3: memref<2x128xf32, #tpu.memory_space<vmem>>, %arg4: memref<2x128xf32, #tpu.memory_space<vmem>>, %arg5: memref<1x128xf32, #tpu.memory_space<vmem>>, %arg6: memref<128x128xf32, #tpu.memory_space<vmem>>, %arg7: memref<1x128xf32, #tpu.memory_space<vmem>>, %arg8: memref<128x128xf32, #tpu.memory_space<vmem>>, %arg9: memref<1x128xf32, #tpu.memory_space<vmem>>, %arg10: memref<16x128xf32, #tpu.memory_space<vmem>>) attributes {dimension_semantics = [#tpu.dimension_semantics<parallel>], iteration_bounds = array<i64: 1>, scalar_prefetch = 0 : i64, scratch_operands = 0 : i64, tpu.core_type = #tpu.core_type<tc>, window_params = [{transform_indices = @transform_0, window_bounds = array<i64: 16, 2>}, {transform_indices = @transform_1, window_bounds = array<i64: 16, 2>}, {pipeline_mode = #tpu.pipeline_mode<synchronous>, transform_indices = @transform_2, window_bounds = array<i64: 2, 128>}, {pipeline_mode = #tpu.pipeline_mode<synchronous>, transform_indices = @transform_3, window_bounds = array<i64: 2, 128>}, {pipeline_mode = #tpu.pipeline_mode<synchronous>, transform_indices = @transform_4, window_bounds = array<i64: 1, 128>}, {pipeline_mode = #tpu.pipeline_mode<synchronous>, transform_indices = @transform_5, window_bounds = array<i64: 128, 128>}, {pipeline_mode = #tpu.pipeline_mode<synchronous>, transform_indices = @transform_6, window_bounds = array<i64: 1, 128>}, {pipeline_mode = #tpu.pipeline_mode<synchronous>, transform_indices = @transform_7, window_bounds = array<i64: 128, 128>}, {pipeline_mode = #tpu.pipeline_mode<synchronous>, transform_indices = @transform_8, window_bounds = array<i64: 1, 128>}, {transform_indices = @transform_9, window_bounds = array<i64: 16, 128>}]} {
    %c0 = arith.constant 0 : index
    %c0_0 = arith.constant 0 : index
    %0 = vector.load %arg1[%c0, %c0_0] : memref<16x2xf32, #tpu.memory_space<vmem>>, vector<16x2xf32>
    %c0_1 = arith.constant 0 : index
    %c0_2 = arith.constant 0 : index
    %1 = vector.load %arg3[%c0_1, %c0_2] : memref<2x128xf32, #tpu.memory_space<vmem>>, vector<2x128xf32>
    %cst = arith.constant dense<0.000000e+00> : vector<16x128xf32>
    %2 = tpu.matmul %0, %1, %cst {dimension_numbers = #tpu.dot_dimension_numbers<[1], [0], [0], [1], [0, 0, 1, 1], [], []>} : vector<16x2xf32>, vector<2x128xf32>, vector<16x128xf32> -> vector<16x128xf32>
    %c0_3 = arith.constant 0 : index
    %c0_4 = arith.constant 0 : index
    %3 = vector.load %arg2[%c0_3, %c0_4] : memref<16x2xf32, #tpu.memory_space<vmem>>, vector<16x2xf32>
    %c0_5 = arith.constant 0 : index
    %c0_6 = arith.constant 0 : index
    %4 = vector.load %arg4[%c0_5, %c0_6] : memref<2x128xf32, #tpu.memory_space<vmem>>, vector<2x128xf32>
    %cst_7 = arith.constant dense<0.000000e+00> : vector<16x128xf32>
    %5 = tpu.matmul %3, %4, %cst_7 {dimension_numbers = #tpu.dot_dimension_numbers<[1], [0], [0], [1], [0, 0, 1, 1], [], []>} : vector<16x2xf32>, vector<2x128xf32>, vector<16x128xf32> -> vector<16x128xf32>
    %6 = arith.addf %2, %5 : vector<16x128xf32>
    %c0_8 = arith.constant 0 : index
    %c0_9 = arith.constant 0 : index
    %7 = vector.load %arg5[%c0_8, %c0_9] : memref<1x128xf32, #tpu.memory_space<vmem>>, vector<1x128xf32>
    %8 = vector.broadcast %7 : vector<1x128xf32> to vector<16x128xf32>
    %9 = arith.addf %6, %8 : vector<16x128xf32>
    %cst_10 = arith.constant 0.000000e+00 : f32
    %10 = vector.broadcast %cst_10 : f32 to vector<16x128xf32>
    %11 = arith.maximumf %9, %10 : vector<16x128xf32>
    %c0_11 = arith.constant 0 : index
    %c0_12 = arith.constant 0 : index
    %12 = vector.load %arg6[%c0_11, %c0_12] : memref<128x128xf32, #tpu.memory_space<vmem>>, vector<128x128xf32>
    %cst_13 = arith.constant dense<0.000000e+00> : vector<16x128xf32>
    %13 = tpu.matmul %11, %12, %cst_13 {dimension_numbers = #tpu.dot_dimension_numbers<[1], [0], [0], [1], [0, 0, 1, 1], [], []>} : vector<16x128xf32>, vector<128x128xf32>, vector<16x128xf32> -> vector<16x128xf32>
    %c0_14 = arith.constant 0 : index
    %c0_15 = arith.constant 0 : index
    %14 = vector.load %arg7[%c0_14, %c0_15] : memref<1x128xf32, #tpu.memory_space<vmem>>, vector<1x128xf32>
    %15 = vector.broadcast %14 : vector<1x128xf32> to vector<16x128xf32>
    %16 = arith.addf %13, %15 : vector<16x128xf32>
    %cst_16 = arith.constant 0.000000e+00 : f32
    %17 = vector.broadcast %cst_16 : f32 to vector<16x128xf32>
    %18 = arith.maximumf %16, %17 : vector<16x128xf32>
    %c0_17 = arith.constant 0 : index
    %c0_18 = arith.constant 0 : index
    %19 = vector.load %arg8[%c0_17, %c0_18] : memref<128x128xf32, #tpu.memory_space<vmem>>, vector<128x128xf32>
    %cst_19 = arith.constant dense<0.000000e+00> : vector<16x128xf32>
    %20 = tpu.matmul %18, %19, %cst_19 {dimension_numbers = #tpu.dot_dimension_numbers<[1], [0], [0], [1], [0, 0, 1, 1], [], []>} : vector<16x128xf32>, vector<128x128xf32>, vector<16x128xf32> -> vector<16x128xf32>
    %c0_20 = arith.constant 0 : index
    %c0_21 = arith.constant 0 : index
    %21 = vector.load %arg9[%c0_20, %c0_21] : memref<1x128xf32, #tpu.memory_space<vmem>>, vector<1x128xf32>
    %22 = vector.broadcast %21 : vector<1x128xf32> to vector<16x128xf32>
    %23 = arith.addf %20, %22 : vector<16x128xf32>
    %cst_22 = arith.constant 0.000000e+00 : f32
    %24 = vector.broadcast %cst_22 : f32 to vector<16x128xf32>
    %25 = arith.maximumf %23, %24 : vector<16x128xf32>
    %c0_23 = arith.constant 0 : index
    %c0_24 = arith.constant 0 : index
    %26 = vector.load %arg10[%c0_23, %c0_24] : memref<16x128xf32, #tpu.memory_space<vmem>>, vector<16x128xf32>
    tpu.vector_store %arg10[%c0_23, %c0_24], %25 {strides = array<i32>} : memref<16x128xf32, #tpu.memory_space<vmem>>, vector<16x128xf32>,
    return
  }
  func.func @transform_0(%arg0: i32) -> (i32, i32) {
    %c0_i32 = arith.constant 0 : i32
    %c0_i32_0 = arith.constant 0 : i32
    return %arg0, %c0_i32 : i32, i32
  }
  func.func @transform_1(%arg0: i32) -> (i32, i32) {
    %c0_i32 = arith.constant 0 : i32
    %c0_i32_0 = arith.constant 0 : i32
    return %arg0, %c0_i32 : i32, i32
  }
  func.func @transform_2(%arg0: i32) -> (i32, i32) {
    %c0_i32 = arith.constant 0 : i32
    %c0_i32_0 = arith.constant 0 : i32
    %c0_i32_1 = arith.constant 0 : i32
    return %c0_i32, %c0_i32_0 : i32, i32
  }
  func.func @transform_3(%arg0: i32) -> (i32, i32) {
    %c0_i32 = arith.constant 0 : i32
    %c0_i32_0 = arith.constant 0 : i32
    %c0_i32_1 = arith.constant 0 : i32
    return %c0_i32, %c0_i32_0 : i32, i32
  }
  func.func @transform_4(%arg0: i32) -> (i32, i32) {
    %c0_i32 = arith.constant 0 : i32
    %c0_i32_0 = arith.constant 0 : i32
    %c0_i32_1 = arith.constant 0 : i32
    return %c0_i32, %c0_i32_0 : i32, i32
  }
  func.func @transform_5(%arg0: i32) -> (i32, i32) {
    %c0_i32 = arith.constant 0 : i32
    %c0_i32_0 = arith.constant 0 : i32
    %c0_i32_1 = arith.constant 0 : i32
    return %c0_i32, %c0_i32_0 : i32, i32
  }
  func.func @transform_6(%arg0: i32) -> (i32, i32) {
    %c0_i32 = arith.constant 0 : i32
    %c0_i32_0 = arith.constant 0 : i32
    %c0_i32_1 = arith.constant 0 : i32
    return %c0_i32, %c0_i32_0 : i32, i32
  }
  func.func @transform_7(%arg0: i32) -> (i32, i32) {
    %c0_i32 = arith.constant 0 : i32
    %c0_i32_0 = arith.constant 0 : i32
    %c0_i32_1 = arith.constant 0 : i32
    return %c0_i32, %c0_i32_0 : i32, i32
  }
  func.func @transform_8(%arg0: i32) -> (i32, i32) {
    %c0_i32 = arith.constant 0 : i32
    %c0_i32_0 = arith.constant 0 : i32
    %c0_i32_1 = arith.constant 0 : i32
    return %c0_i32, %c0_i32_0 : i32, i32
  }
  func.func @transform_9(%arg0: i32) -> (i32, i32) {
    %c0_i32 = arith.constant 0 : i32
    %c0_i32_0 = arith.constant 0 : i32
    return %arg0, %c0_i32 : i32, i32
  }
}

</mosaic_0001>

<llo_original>
// kernel: enhanced_recognition_forward.1
$region0: #{enhanced_recognition_forward.1}
  #allocation0 [shape = 'u32[]', space=smem, size = 0x4, offset = 0x4, fixed_abs, tag = 'smem constant byte address 0x4 - core index']
  #allocation1 [shape = 'u32[144,128]{1,0:T(1,128)}', space=vmem, size = 0x12000, scoped, tag = 'internal scratch']
  %s0 = inlined_call_operand.vmem [shape: f32[16,2], index: 0, kind: input, shape index: {}]
  %s1 = inlined_call_operand.vmem [shape: f32[16,2], index: 1, kind: input, shape index: {}]
  %s2 = inlined_call_operand.vmem [shape: f32[2,128], index: 2, kind: input, shape index: {}]
  %s3 = inlined_call_operand.vmem [shape: f32[2,128], index: 3, kind: input, shape index: {}]
  %s4 = inlined_call_operand.vmem [shape: f32[1,128], index: 4, kind: input, shape index: {}]
  %s5 = inlined_call_operand.hbm [shape: f32[128,128], index: 5, kind: input, shape index: {}]
  %s6 = inlined_call_operand.vmem [shape: f32[1,128], index: 6, kind: input, shape index: {}]
  %s7 = inlined_call_operand.hbm [shape: f32[128,128], index: 7, kind: input, shape index: {}]
  %s8 = inlined_call_operand.vmem [shape: f32[1,128], index: 8, kind: input, shape index: {}]
  %s9 = inlined_call_operand.hbm [shape: f32[16,128], index: 9, kind: output, shape index: {}]
  %s10 = sld [smem:[#allocation0]]
  $region54: #{enhanced_recognition_forward.1} parent=0
    _
  %s12 = ssub.s32 1, %s10
  %s13 = scalar_select 0, %s12, %s10
  $region1: #{enhanced_recognition_forward.1} parent=0
    #allocation2 [shape = 'u8[65536]{0}', space=vmem, size = 0x10000, scoped, tag = 'input window, operand 5, single buffered']
    #allocation3 [shape = 's32[1]{0}', space=sflag, size = 0x4, scoped, tag = 'scoped memory for enhanced_recognition_forward.1']
    #allocation4 [shape = 's32[1]{0}', space=sflag, size = 0x4, scoped, tag = 'scoped memory for enhanced_recognition_forward.1']
    #allocation5 [shape = 'u8[65536]{0}', space=vmem, size = 0x10000, scoped, tag = 'input window, operand 7, single buffered']
    #allocation6 [shape = 's32[1]{0}', space=sflag, size = 0x4, scoped, tag = 'scoped memory for enhanced_recognition_forward.1']
    #allocation7 [shape = 'u8[8192]{0}', space=vmem, size = 0x2000, scoped, tag = 'output window, operand 0, single buffered']
    %14 = vsyncpa [#allocation3], 0
    %15 = vsyncpa [#allocation6], 0
    %16 = vsyncpa [#allocation4], 0
    // Predicated region
    $region2: #{enhanced_recognition_forward.1} parent=1 // pred_check
      _
    $region3: #{enhanced_recognition_forward.1} parent=1 // pred_check_branch
      %18 = sbr.rel (0) target = $region5
    $region4: #{enhanced_recognition_forward.1} parent=1 // pred_region
      _
    $region5: #{enhanced_recognition_forward.1} parent=1 // pred_fallthru
      _
    // Predicated region
    $region6: #{enhanced_recognition_forward.1} parent=1 // pred_check
      _
    $region7: #{enhanced_recognition_forward.1} parent=1 // pred_check_branch
      %20 = sbr.rel (0) target = $region9
    $region8: #{enhanced_recognition_forward.1} parent=1 // pred_region
      _
    $region9: #{enhanced_recognition_forward.1} parent=1 // pred_fallthru
      _
    // Predicated region
    $region10: #{enhanced_recognition_forward.1} parent=1 // pred_check
      _
    $region11: #{enhanced_recognition_forward.1} parent=1 // pred_check_branch
      %22 = sbr.rel (0) target = $region13
    $region12: #{enhanced_recognition_forward.1} parent=1 // pred_region
      _
    $region13: #{enhanced_recognition_forward.1} parent=1 // pred_fallthru
      _
    // Predicated region
    $region14: #{enhanced_recognition_forward.1} parent=1 // pred_check
      _
    $region15: #{enhanced_recognition_forward.1} parent=1 // pred_check_branch
      %24 = sbr.rel (0) target = $region17
    $region16: #{enhanced_recognition_forward.1} parent=1 // pred_region
      _
    $region17: #{enhanced_recognition_forward.1} parent=1 // pred_fallthru
      _
    // Predicated region
    $region18: #{enhanced_recognition_forward.1} parent=1 // pred_check
      _
    $region19: #{enhanced_recognition_forward.1} parent=1 // pred_check_branch
      %26 = sbr.rel (0) target = $region21
    $region20: #{enhanced_recognition_forward.1} parent=1 // pred_region
      _
    $region21: #{enhanced_recognition_forward.1} parent=1 // pred_fallthru
      _
    // Predicated region
    $region22: #{enhanced_recognition_forward.1} parent=1 // pred_check
      _
    $region23: #{enhanced_recognition_forward.1} parent=1 // pred_check_branch
      %28 = sbr.rel (0) target = $region25
    $region24: #{enhanced_recognition_forward.1} parent=1 // pred_region
      %s30 = ssub.s32 2048, 2048
      %31 = vsyncadd [#allocation3], %s30
      %s32 = sshll.u32 [#allocation2], 4
      %s33 = int_to_ptr.vmem [resolvable:$true] %s32
      %38 = dma.hbm_to_vmem [thread:$0]  %s5, 2048, %s33, [#allocation3], 128, 128, 8
    $region25: #{enhanced_recognition_forward.1} parent=1 // pred_fallthru
      _
    // Predicated region
    $region26: #{enhanced_recognition_forward.1} parent=1 // pred_check
      _
    $region27: #{enhanced_recognition_forward.1} parent=1 // pred_check_branch
      %40 = sbr.rel (0) target = $region29
    $region28: #{enhanced_recognition_forward.1} parent=1 // pred_region
      _
    $region29: #{enhanced_recognition_forward.1} parent=1 // pred_fallthru
      _
    // Predicated region
    $region30: #{enhanced_recognition_forward.1} parent=1 // pred_check
      _
    $region31: #{enhanced_recognition_forward.1} parent=1 // pred_check_branch
      %42 = sbr.rel (0) target = $region33
    $region32: #{enhanced_recognition_forward.1} parent=1 // pred_region
      %s44 = ssub.s32 2048, 2048
      %45 = vsyncadd [#allocation6], %s44
      %s46 = sshll.u32 [#allocation5], 4
      %s47 = int_to_ptr.vmem [resolvable:$true] %s46
      %52 = dma.hbm_to_vmem [thread:$0]  %s7, 2048, %s47, [#allocation6], 128, 128, 8
    $region33: #{enhanced_recognition_forward.1} parent=1 // pred_fallthru
      _
    // Predicated region
    $region34: #{enhanced_recognition_forward.1} parent=1 // pred_check
      _
    $region35: #{enhanced_recognition_forward.1} parent=1 // pred_check_branch
      %54 = sbr.rel (0) target = $region37
    $region36: #{enhanced_recognition_forward.1} parent=1 // pred_region
      _
    $region37: #{enhanced_recognition_forward.1} parent=1 // pred_fallthru
      _
    // Predicated region
    $region38: #{enhanced_recognition_forward.1} parent=1 // pred_check
      _
    $region39: #{enhanced_recognition_forward.1} parent=1 // pred_check_branch
      %56 = sbr.rel (0) target = $region41
    $region40: #{enhanced_recognition_forward.1} parent=1 // pred_region
      %57 = dma.done [#allocation3], 2048
    $region41: #{enhanced_recognition_forward.1} parent=1 // pred_fallthru
      _
    // Predicated region
    $region42: #{enhanced_recognition_forward.1} parent=1 // pred_check
      _
    $region43: #{enhanced_recognition_forward.1} parent=1 // pred_check_branch
      %59 = sbr.rel (0) target = $region45
    $region44: #{enhanced_recognition_forward.1} parent=1 // pred_region
      %60 = dma.done [#allocation6], 2048
    $region45: #{enhanced_recognition_forward.1} parent=1 // pred_fallthru
      _
    %v61 = vld [vmem:[%s0] sm:$0xff]
    %v62 = vld [vmem:[%s0 + $0x8] sm:$0xff]
    %v63 = vld [vmem:[%s2] sm:$0x3]
    %v64 = vld [vmem:[%s1] sm:$0xff]
    %v65 = vld [vmem:[%s1 + $0x8] sm:$0xff]
    %v66 = vld [vmem:[%s3] sm:$0x3]
    %vm67 = vcmask 15360
    %v69 = vsel %vm67, %v64, 0
    %v72 = vsel %vm67, %v65, 0
    %vm74 = vcmask 1041408
    %v76 = vsel %vm74, %v66, 0
    %78 = vmatprep.subr.mxu0 0.0
    %79 = vmatpush1.msra.mxu0 %v76
    %80 = vmatprep.subr.mxu0 0.0
    %81 = vmatpush1.msra.mxu0 0.0
    %82 = vmatprep.subr.mxu0 0.0
    %83 = vmatpush1.msra.mxu0 0.0
    %84 = vmatprep.subr.mxu0 0.0
    %85 = vmatpush1.msra.mxu0 0.0
    %86 = vmatprep.subr.mxu0 0.0
    %87 = vmatpush1.msra.mxu0 0.0
    %88 = vmatprep.subr.mxu0 0.0
    %89 = vmatpush1.msra.mxu0 0.0
    %90 = vmatprep.subr.mxu0 0.0
    %91 = vmatpush1.msra.mxu0 0.0
    %92 = vmatprep.subr.mxu0 0.0
    %93 = vmatpush1.msra.mxu0 0.0
    %94 = vmatprep.subr.mxu0 0.0
    %95 = vmatpush1.msra.mxu0 0.0
    %96 = vmatprep.subr.mxu0 0.0
    %97 = vmatpush1.msra.mxu0 0.0
    %98 = vmatprep.subr.mxu0 0.0
    %99 = vmatpush1.msra.mxu0 0.0
    %100 = vmatprep.subr.mxu0 0.0
    %101 = vmatpush1.msra.mxu0 0.0
    %102 = vmatprep.subr.mxu0 0.0
    %103 = vmatpush1.msra.mxu0 0.0
    %104 = vmatprep.subr.mxu0 0.0
    %105 = vmatpush1.msra.mxu0 0.0
    %106 = vmatprep.subr.mxu0 0.0
    %107 = vmatpush1.msra.mxu0 0.0
    %108 = vmatprep.subr.mxu0 0.0
    %109 = vmatpush1.msra.mxu0 0.0
    %110 = vmatprep.subr.mxu0 0.0
    %111 = vmatpush1.msra.mxu0 0.0
    %112 = vmatprep.subr.mxu0 0.0
    %113 = vmatpush1.msra.mxu0 0.0
    %114 = vmatprep.subr.mxu0 0.0
    %115 = vmatpush1.msra.mxu0 0.0
    %116 = vmatprep.subr.mxu0 0.0
    %117 = vmatpush1.msra.mxu0 0.0
    %118 = vmatprep.subr.mxu0 0.0
    %119 = vmatpush1.msra.mxu0 0.0
    %120 = vmatprep.subr.mxu0 0.0
    %121 = vmatpush1.msra.mxu0 0.0
    %122 = vmatprep.subr.mxu0 0.0
    %123 = vmatpush1.msra.mxu0 0.0
    %124 = vmatprep.subr.mxu0 0.0
    %125 = vmatpush1.msra.mxu0 0.0
    %126 = vmatprep.subr.mxu0 0.0
    %127 = vmatpush1.msra.mxu0 0.0
    %128 = vmatprep.subr.mxu0 0.0
    %129 = vmatpush1.msra.mxu0 0.0
    %130 = vmatprep.subr.mxu0 0.0
    %131 = vmatpush1.msra.mxu0 0.0
    %132 = vmatprep.subr.mxu0 0.0
    %133 = vmatpush1.msra.mxu0 0.0
    %134 = vmatprep.subr.mxu0 0.0
    %135 = vmatpush1.msra.mxu0 0.0
    %136 = vmatprep.subr.mxu0 0.0
    %137 = vmatpush1.msra.mxu0 0.0
    %138 = vmatprep.subr.mxu0 0.0
    %139 = vmatpush1.msra.mxu0 0.0
    %140 = vmatprep.subr.mxu0 0.0
    %141 = vmatpush1.msra.mxu0 0.0
    %142 = vmatprep.mubr.f32.mxu0 0.0
    %143 = vmatmul.mubr.f32.gmra.mrb[0].mxu0 %v69
    %v144 = vpop.f32.mrb[0].mxu0
    %v145 = vadd.f32 0.0, %v144
    %v146 = vpop.f32.mrb[0].mxu0
    %147 = vmatprep.mubr.f32.mxu0 0.0
    %148 = vmatmul.mubr.f32.gmra.mrb[0].mxu0 %v72
    %v149 = vpop.f32.mrb[0].mxu0
    %v150 = vadd.f32 0.0, %v149
    %v151 = vpop.f32.mrb[0].mxu0
    %152 = vdwg.mxu0
    %v154 = vsel %vm67, %v61, 0
    %v157 = vsel %vm67, %v62, 0
    %v160 = vsel %vm74, %v63, 0
    %162 = vmatprep.subr.mxu0 0.0
    %163 = vmatpush1.msra.mxu0 %v160
    %164 = vmatprep.subr.mxu0 0.0
    %165 = vmatpush1.msra.mxu0 0.0
    %166 = vmatprep.subr.mxu0 0.0
    %167 = vmatpush1.msra.mxu0 0.0
    %168 = vmatprep.subr.mxu0 0.0
    %169 = vmatpush1.msra.mxu0 0.0
    %170 = vmatprep.subr.mxu0 0.0
    %171 = vmatpush1.msra.mxu0 0.0
    %172 = vmatprep.subr.mxu0 0.0
    %173 = vmatpush1.msra.mxu0 0.0
    %174 = vmatprep.subr.mxu0 0.0
    %175 = vmatpush1.msra.mxu0 0.0
    %176 = vmatprep.subr.mxu0 0.0
    %177 = vmatpush1.msra.mxu0 0.0
    %178 = vmatprep.subr.mxu0 0.0
    %179 = vmatpush1.msra.mxu0 0.0
    %180 = vmatprep.subr.mxu0 0.0
    %181 = vmatpush1.msra.mxu0 0.0
    %182 = vmatprep.subr.mxu0 0.0
    %183 = vmatpush1.msra.mxu0 0.0
    %184 = vmatprep.subr.mxu0 0.0
    %185 = vmatpush1.msra.mxu0 0.0
    %186 = vmatprep.subr.mxu0 0.0
    %187 = vmatpush1.msra.mxu0 0.0
    %188 = vmatprep.subr.mxu0 0.0
    %189 = vmatpush1.msra.mxu0 0.0
    %190 = vmatprep.subr.mxu0 0.0
    %191 = vmatpush1.msra.mxu0 0.0
    %192 = vmatprep.subr.mxu0 0.0
    %193 = vmatpush1.msra.mxu0 0.0
    %194 = vmatprep.subr.mxu0 0.0
    %195 = vmatpush1.msra.mxu0 0.0
    %196 = vmatprep.subr.mxu0 0.0
    %197 = vmatpush1.msra.mxu0 0.0
    %198 = vmatprep.subr.mxu0 0.0
    %199 = vmatpush1.msra.mxu0 0.0
    %200 = vmatprep.subr.mxu0 0.0
    %201 = vmatpush1.msra.mxu0 0.0
    %202 = vmatprep.subr.mxu0 0.0
    %203 = vmatpush1.msra.mxu0 0.0
    %204 = vmatprep.subr.mxu0 0.0
    %205 = vmatpush1.msra.mxu0 0.0
    %206 = vmatprep.subr.mxu0 0.0
    %207 = vmatpush1.msra.mxu0 0.0
    %208 = vmatprep.subr.mxu0 0.0
    %209 = vmatpush1.msra.mxu0 0.0
    %210 = vmatprep.subr.mxu0 0.0
    %211 = vmatpush1.msra.mxu0 0.0
    %212 = vmatprep.subr.mxu0 0.0
    %213 = vmatpush1.msra.mxu0 0.0
    %214 = vmatprep.subr.mxu0 0.0
    %215 = vmatpush1.msra.mxu0 0.0
    %216 = vmatprep.subr.mxu0 0.0
    %217 = vmatpush1.msra.mxu0 0.0
    %218 = vmatprep.subr.mxu0 0.0
    %219 = vmatpush1.msra.mxu0 0.0
    %220 = vmatprep.subr.mxu0 0.0
    %221 = vmatpush1.msra.mxu0 0.0
    %222 = vmatprep.subr.mxu0 0.0
    %223 = vmatpush1.msra.mxu0 0.0
    %224 = vmatprep.subr.mxu0 0.0
    %225 = vmatpush1.msra.mxu0 0.0
    %226 = vmatprep.mubr.f32.mxu0 0.0
    %227 = vmatmul.mubr.f32.gmra.mrb[0].mxu0 %v154
    %v228 = vpop.f32.mrb[0].mxu0
    %v229 = vadd.f32 %v145, %v228
    %v230 = vpop.f32.mrb[0].mxu0
    %231 = vmatprep.mubr.f32.mxu0 0.0
    %232 = vmatmul.mubr.f32.gmra.mrb[0].mxu0 %v157
    %v233 = vpop.f32.mrb[0].mxu0
    %v234 = vadd.f32 %v150, %v233
    %v235 = vpop.f32.mrb[0].mxu0
    %236 = vdwg.mxu0
    %v237 = vld [vmem:[%s4] sm:$0x1]
    %v239 = vlaneseq
    %v240 = vshrl.u32 %v239, 7
    %v241 = vsub.s32 0, %v240
    %v242 = vrot.slane %v237, %v241
    %v244 = vadd.f32 %v229, %v242
    %v245 = vadd.f32 %v234, %v242
    %v246 = vmax.f32 %v244, 0.0
    %v247 = vmax.f32 %v245, 0.0
    %v248 = vld [vmem:[#allocation2] sm:$0xff]
    %v249 = vld [vmem:[#allocation2 + $0x8] sm:$0xff]
    %v250 = vld [vmem:[#allocation2 + $0x10] sm:$0xff]
    %v251 = vld [vmem:[#allocation2 + $0x18] sm:$0xff]
    %v252 = vld [vmem:[#allocation2 + $0x20] sm:$0xff]
    %v253 = vld [vmem:[#allocation2 + $0x28] sm:$0xff]
    %v254 = vld [vmem:[#allocation2 + $0x30] sm:$0xff]
    %v255 = vld [vmem:[#allocation2 + $0x38] sm:$0xff]
    %v256 = vld [vmem:[#allocation2 + $0x40] sm:$0xff]
    %v257 = vld [vmem:[#allocation2 + $0x48] sm:$0xff]
    %v258 = vld [vmem:[#allocation2 + $0x50] sm:$0xff]
    %v259 = vld [vmem:[#allocation2 + $0x58] sm:$0xff]
    %v260 = vld [vmem:[#allocation2 + $0x60] sm:$0xff]
    %v261 = vld [vmem:[#allocation2 + $0x68] sm:$0xff]
    %v262 = vld [vmem:[#allocation2 + $0x70] sm:$0xff]
    %v263 = vld [vmem:[#allocation2 + $0x78] sm:$0xff]
    %v264 = vld [vmem:[%s6] sm:$0x1]
    %v266 = vlaneseq
    %v267 = vshrl.u32 %v266, 7
    %v268 = vsub.s32 0, %v267
    %v269 = vrot.slane %v264, %v268
    %271 = vmatprep.subr.mxu0 0.0
    %272 = vmatpush1.msra.mxu0 %v248
    %273 = vmatprep.subr.mxu0 0.0
    %274 = vmatpush1.msra.mxu0 %v249
    %275 = vmatprep.subr.mxu0 0.0
    %276 = vmatpush1.msra.mxu0 %v250
    %277 = vmatprep.subr.mxu0 0.0
    %278 = vmatpush1.msra.mxu0 %v251
    %279 = vmatprep.subr.mxu0 0.0
    %280 = vmatpush1.msra.mxu0 %v252
    %281 = vmatprep.subr.mxu0 0.0
    %282 = vmatpush1.msra.mxu0 %v253
    %283 = vmatprep.subr.mxu0 0.0
    %284 = vmatpush1.msra.mxu0 %v254
    %285 = vmatprep.subr.mxu0 0.0
    %286 = vmatpush1.msra.mxu0 %v255
    %287 = vmatprep.subr.mxu0 0.0
    %288 = vmatpush1.msra.mxu0 %v256
    %289 = vmatprep.subr.mxu0 0.0
    %290 = vmatpush1.msra.mxu0 %v257
    %291 = vmatprep.subr.mxu0 0.0
    %292 = vmatpush1.msra.mxu0 %v258
    %293 = vmatprep.subr.mxu0 0.0
    %294 = vmatpush1.msra.mxu0 %v259
    %295 = vmatprep.subr.mxu0 0.0
    %296 = vmatpush1.msra.mxu0 %v260
    %297 = vmatprep.subr.mxu0 0.0
    %298 = vmatpush1.msra.mxu0 %v261
    %299 = vmatprep.subr.mxu0 0.0
    %300 = vmatpush1.msra.mxu0 %v262
    %301 = vmatprep.subr.mxu0 0.0
    %302 = vmatpush1.msra.mxu0 %v263
    %303 = vmatprep.subr.mxu0 0.0
    %304 = vmatpush1.msra.mxu0 0.0
    %305 = vmatprep.subr.mxu0 0.0
    %306 = vmatpush1.msra.mxu0 0.0
    %307 = vmatprep.subr.mxu0 0.0
    %308 = vmatpush1.msra.mxu0 0.0
    %309 = vmatprep.subr.mxu0 0.0
    %310 = vmatpush1.msra.mxu0 0.0
    %311 = vmatprep.subr.mxu0 0.0
    %312 = vmatpush1.msra.mxu0 0.0
    %313 = vmatprep.subr.mxu0 0.0
    %314 = vmatpush1.msra.mxu0 0.0
    %315 = vmatprep.subr.mxu0 0.0
    %316 = vmatpush1.msra.mxu0 0.0
    %317 = vmatprep.subr.mxu0 0.0
    %318 = vmatpush1.msra.mxu0 0.0
    %319 = vmatprep.subr.mxu0 0.0
    %320 = vmatpush1.msra.mxu0 0.0
    %321 = vmatprep.subr.mxu0 0.0
    %322 = vmatpush1.msra.mxu0 0.0
    %323 = vmatprep.subr.mxu0 0.0
    %324 = vmatpush1.msra.mxu0 0.0
    %325 = vmatprep.subr.mxu0 0.0
    %326 = vmatpush1.msra.mxu0 0.0
    %327 = vmatprep.subr.mxu0 0.0
    %328 = vmatpush1.msra.mxu0 0.0
    %329 = vmatprep.subr.mxu0 0.0
    %330 = vmatpush1.msra.mxu0 0.0
    %331 = vmatprep.subr.mxu0 0.0
    %332 = vmatpush1.msra.mxu0 0.0
    %333 = vmatprep.subr.mxu0 0.0
    %334 = vmatpush1.msra.mxu0 0.0
    %335 = vmatprep.mubr.f32.mxu0 0.0
    %336 = vmatmul.mubr.f32.gmra.mrb[0].mxu0 %v246
    %v337 = vpop.f32.mrb[0].mxu0
    %v338 = vadd.f32 %v269, %v337
    %v339 = vpop.f32.mrb[0].mxu0
    %340 = vmatprep.mubr.f32.mxu0 0.0
    %341 = vmatmul.mubr.f32.gmra.mrb[0].mxu0 %v247
    %v342 = vpop.f32.mrb[0].mxu0
    %v343 = vadd.f32 %v269, %v342
    %v344 = vpop.f32.mrb[0].mxu0
    %345 = vdwg.mxu0
    %v346 = vmax.f32 %v338, 0.0
    %v347 = vmax.f32 %v343, 0.0
    %v348 = vld [vmem:[#allocation5] sm:$0xff]
    %v349 = vld [vmem:[#allocation5 + $0x8] sm:$0xff]
    %v350 = vld [vmem:[#allocation5 + $0x10] sm:$0xff]
    %v351 = vld [vmem:[#allocation5 + $0x18] sm:$0xff]
    %v352 = vld [vmem:[#allocation5 + $0x20] sm:$0xff]
    %v353 = vld [vmem:[#allocation5 + $0x28] sm:$0xff]
    %v354 = vld [vmem:[#allocation5 + $0x30] sm:$0xff]
    %v355 = vld [vmem:[#allocation5 + $0x38] sm:$0xff]
    %v356 = vld [vmem:[#allocation5 + $0x40] sm:$0xff]
    %v357 = vld [vmem:[#allocation5 + $0x48] sm:$0xff]
    %v358 = vld [vmem:[#allocation5 + $0x50] sm:$0xff]
    %v359 = vld [vmem:[#allocation5 + $0x58] sm:$0xff]
    %v360 = vld [vmem:[#allocation5 + $0x60] sm:$0xff]
    %v361 = vld [vmem:[#allocation5 + $0x68] sm:$0xff]
    %v362 = vld [vmem:[#allocation5 + $0x70] sm:$0xff]
    %v363 = vld [vmem:[#allocation5 + $0x78] sm:$0xff]
    %v364 = vld [vmem:[%s8] sm:$0x1]
    %v366 = vlaneseq
    %v367 = vshrl.u32 %v366, 7
    %v368 = vsub.s32 0, %v367
    %v369 = vrot.slane %v364, %v368
    %371 = vmatprep.subr.mxu0 0.0
    %372 = vmatpush1.msra.mxu0 %v348
    %373 = vmatprep.subr.mxu0 0.0
    %374 = vmatpush1.msra.mxu0 %v349
    %375 = vmatprep.subr.mxu0 0.0
    %376 = vmatpush1.msra.mxu0 %v350
    %377 = vmatprep.subr.mxu0 0.0
    %378 = vmatpush1.msra.mxu0 %v351
    %379 = vmatprep.subr.mxu0 0.0
    %380 = vmatpush1.msra.mxu0 %v352
    %381 = vmatprep.subr.mxu0 0.0
    %382 = vmatpush1.msra.mxu0 %v353
    %383 = vmatprep.subr.mxu0 0.0
    %384 = vmatpush1.msra.mxu0 %v354
    %385 = vmatprep.subr.mxu0 0.0
    %386 = vmatpush1.msra.mxu0 %v355
    %387 = vmatprep.subr.mxu0 0.0
    %388 = vmatpush1.msra.mxu0 %v356
    %389 = vmatprep.subr.mxu0 0.0
    %390 = vmatpush1.msra.mxu0 %v357
    %391 = vmatprep.subr.mxu0 0.0
    %392 = vmatpush1.msra.mxu0 %v358
    %393 = vmatprep.subr.mxu0 0.0
    %394 = vmatpush1.msra.mxu0 %v359
    %395 = vmatprep.subr.mxu0 0.0
    %396 = vmatpush1.msra.mxu0 %v360
    %397 = vmatprep.subr.mxu0 0.0
    %398 = vmatpush1.msra.mxu0 %v361
    %399 = vmatprep.subr.mxu0 0.0
    %400 = vmatpush1.msra.mxu0 %v362
    %401 = vmatprep.subr.mxu0 0.0
    %402 = vmatpush1.msra.mxu0 %v363
    %403 = vmatprep.subr.mxu0 0.0
    %404 = vmatpush1.msra.mxu0 0.0
    %405 = vmatprep.subr.mxu0 0.0
    %406 = vmatpush1.msra.mxu0 0.0
    %407 = vmatprep.subr.mxu0 0.0
    %408 = vmatpush1.msra.mxu0 0.0
    %409 = vmatprep.subr.mxu0 0.0
    %410 = vmatpush1.msra.mxu0 0.0
    %411 = vmatprep.subr.mxu0 0.0
    %412 = vmatpush1.msra.mxu0 0.0
    %413 = vmatprep.subr.mxu0 0.0
    %414 = vmatpush1.msra.mxu0 0.0
    %415 = vmatprep.subr.mxu0 0.0
    %416 = vmatpush1.msra.mxu0 0.0
    %417 = vmatprep.subr.mxu0 0.0
    %418 = vmatpush1.msra.mxu0 0.0
    %419 = vmatprep.subr.mxu0 0.0
    %420 = vmatpush1.msra.mxu0 0.0
    %421 = vmatprep.subr.mxu0 0.0
    %422 = vmatpush1.msra.mxu0 0.0
    %423 = vmatprep.subr.mxu0 0.0
    %424 = vmatpush1.msra.mxu0 0.0
    %425 = vmatprep.subr.mxu0 0.0
    %426 = vmatpush1.msra.mxu0 0.0
    %427 = vmatprep.subr.mxu0 0.0
    %428 = vmatpush1.msra.mxu0 0.0
    %429 = vmatprep.subr.mxu0 0.0
    %430 = vmatpush1.msra.mxu0 0.0
    %431 = vmatprep.subr.mxu0 0.0
    %432 = vmatpush1.msra.mxu0 0.0
    %433 = vmatprep.subr.mxu0 0.0
    %434 = vmatpush1.msra.mxu0 0.0
    %435 = vmatprep.mubr.f32.mxu0 0.0
    %436 = vmatmul.mubr.f32.gmra.mrb[0].mxu0 %v346
    %v437 = vpop.f32.mrb[0].mxu0
    %v438 = vadd.f32 %v369, %v437
    %v439 = vpop.f32.mrb[0].mxu0
    %440 = vmatprep.mubr.f32.mxu0 0.0
    %441 = vmatmul.mubr.f32.gmra.mrb[0].mxu0 %v347
    %v442 = vpop.f32.mrb[0].mxu0
    %v443 = vadd.f32 %v369, %v442
    %v444 = vpop.f32.mrb[0].mxu0
    %445 = vdwg.mxu0
    %v446 = vmax.f32 %v438, 0.0
    %v447 = vmax.f32 %v443, 0.0
    %448 = vst [vmem:[#allocation7] sm:$0xff] %v446
    %449 = vst [vmem:[#allocation7 + $0x8] sm:$0xff] %v447
    // Predicated region
    $region46: #{enhanced_recognition_forward.1} parent=1 // pred_check
      _
    $region47: #{enhanced_recognition_forward.1} parent=1 // pred_check_branch
      %451 = sbr.rel (0) target = $region49
    $region48: #{enhanced_recognition_forward.1} parent=1 // pred_region
      %s453 = ssub.s32 256, 256
      %454 = vsyncadd [#allocation4], %s453
      %s455 = sshll.u32 [#allocation7], 4
      %s456 = int_to_ptr.vmem [resolvable:$true] %s455
      %461 = dma.vmem_to_hbm [thread:$0]  %s456, 256, %s9, [#allocation4], 128, 128, 8
    $region49: #{enhanced_recognition_forward.1} parent=1 // pred_fallthru
      _
    // Predicated region
    $region50: #{enhanced_recognition_forward.1} parent=1 // pred_check
      _
    $region51: #{enhanced_recognition_forward.1} parent=1 // pred_check_branch
      %463 = sbr.rel (0) target = $region53
    $region52: #{enhanced_recognition_forward.1} parent=1 // pred_region
      %464 = dma.done [#allocation4], 256
    $region53: #{enhanced_recognition_forward.1} parent=1 // pred_fallthru
      _
    %465 = vsyncpa [#allocation3], 1
    %466 = vsyncpa [#allocation6], 1
    %467 = vsyncpa [#allocation4], 1

</llo_original>
